<compile_context>
chip_gen: v6e
topology: v6e:2x2x1
jax: 0.10.0
libtpu: 0.0.40
codegen_flags: <defaults>
</compile_context>

<pallas_src>
import functools

import jax
import jax.numpy as jnp
from jax.experimental import pallas as pl
from jax.experimental.pallas import tpu as pltpu


def _round_up(x, m):
    return (x + m - 1) // m * m


def _largest_aligned_divisor(n, align, cap):
    """Largest d with d % align == 0, n % d == 0, d <= cap; None if impossible."""
    cap = min(cap, n)
    d = (cap // align) * align
    while d >= align:
        if n % d == 0:
            return d
        d -= align
    return None


@functools.lru_cache(maxsize=1)
def _tpu_hw():
    """Returns (vmem_capacity_bytes, num_tensorcores_per_chip, is_v5e)."""
    kind = ""
    try:
        kind = jax.devices()[0].device_kind.lower()
    except Exception:
        pass
    vmem_cap = None
    try:
        vmem_cap = int(pltpu.get_tpu_info().vmem_capacity_bytes)
    except Exception:
        vmem_cap = None
    is_v7 = "v7" in kind
    if vmem_cap is None or vmem_cap <= 0:
        vmem_cap = (64 << 20) if is_v7 else (128 << 20)
    num_tc = 2 if is_v7 else 1
    is_v5e = ("v5e" in kind) or ("v5 lite" in kind) or ("v5litepod" in kind)
    return vmem_cap, num_tc, is_v5e


def _weight_spec(shape, index_map, nbuf):
    """BlockSpec for a streamed weight tile, optionally with deeper buffering."""
    if nbuf > 2 and hasattr(pl, "Buffered"):
        try:
            return pl.BlockSpec(shape, index_map, pipeline_mode=pl.Buffered(nbuf))
        except TypeError:
            pass
    return pl.BlockSpec(shape, index_map)


def _ffn_kernel_resident(x_ref, w1_ref, b1_ref, w2_ref, b2_ref, o_ref):
    """Whole FFN for one row tile; W1/W2 blocks are constant across the grid."""
    h = jnp.dot(x_ref[...], w1_ref[...], preferred_element_type=jnp.float32)
    h = jnp.maximum(h + b1_ref[...].astype(jnp.float32), 0.0)
    # TODO(synk): train-mode dropout not implemented (module's dropout=None path).
    h = h.astype(w2_ref.dtype)  # bf16 MXU fast path when weights are bf16.
    out = jnp.dot(h, w2_ref[...], preferred_element_type=jnp.float32)
    o_ref[...] = (out + b2_ref[...].astype(jnp.float32)).astype(o_ref.dtype)


def _ffn_kernel_tiled(x_ref, w1_ref, b1_ref, w2_ref, b2_ref, o_ref, acc_ref):
    """One (row_tile, hidden_tile) grid step with f32 accumulation over hidden."""
    k = pl.program_id(1)

    @pl.when(k == 0)
    def _init():
        acc_ref[...] = jnp.zeros_like(acc_ref)

    h = jnp.dot(x_ref[...], w1_ref[...], preferred_element_type=jnp.float32)
    h = jnp.maximum(h + b1_ref[...].astype(jnp.float32), 0.0)
    # TODO(synk): train-mode dropout not implemented (module's dropout=None path).
    h = h.astype(w2_ref.dtype)

    acc_ref[...] += jnp.dot(h, w2_ref[...], preferred_element_type=jnp.float32)

    @pl.when(k == pl.num_programs(1) - 1)
    def _finalize():
        out = acc_ref[...] + b2_ref[...].astype(jnp.float32)
        o_ref[...] = out.astype(o_ref.dtype)


@functools.partial(jax.jit, static_argnames=("block_rows", "block_h", "cast_to_bf16"))
def feed_forward(x, w1, b1, w2, b2, *, block_rows=512, block_h=512,
                 cast_to_bf16=False):
    """x: (..., E) -> (..., E), matching FeedForward.forward (dropout=None)."""
    orig_shape = x.shape
    out_dtype = x.dtype
    E = orig_shape[-1]
    H = w1.shape[1]
    x2d = x.reshape(-1, E)
    rows = x2d.shape[0]

    if cast_to_bf16 and x2d.dtype == jnp.float32:
        # bf16 MXU fast path; accumulation stays f32 via preferred_element_type.
        x2d = x2d.astype(jnp.bfloat16)
        w1 = w1.astype(jnp.bfloat16)
        w2 = w2.astype(jnp.bfloat16)

    xsz = x2d.dtype.itemsize
    wsz = w1.dtype.itemsize
    osz = out_dtype.itemsize

    vmem_cap, num_tc, is_v5e = _tpu_hw()
    budget = max(vmem_cap - (16 << 20), 16 << 20)   # tile-fitting budget
    vmem_ceiling = vmem_cap - (8 << 20)             # never request more than this

    # Sublane-aligned row tile (8 for 4-byte, 16 for 2-byte, 32 for 1-byte).
    sublane = 8 * max(1, 4 // xsz)
    rows_cap = _round_up(rows, sublane)
    br_cap = min(rows_cap, 1024)
    if num_tc >= 2 and rows > sublane:
        # v7x: keep >= 2 row tiles so both TensorCores get work.
        br_cap = min(br_cap, _round_up(-(-rows // num_tc), sublane))
    br = min(_round_up(block_rows, sublane), max(br_cap, sublane))

    def resident_vmem(br_):
        return (2 * br_ * E * xsz
                + 2 * (E * H + H * E + H + E) * wsz   # weights (double-buffer headroom)
                + 2 * br_ * E * osz
                + 2 * br_ * H * 4)                    # (br, H) f32 intermediate

    def tiled_vmem(br_, th_, nbuf_w):
        return (2 * br_ * E * xsz
                + nbuf_w * (E * th_ + th_ * E + th_) * wsz
                + 2 * E * wsz
                + 2 * br_ * E * osz
                + br_ * E * 4                          # f32 accumulator scratch
                + 2 * br_ * th_ * 4)                   # (br, th) f32 intermediate

    # ---- choose schedule -------------------------------------------------
    resident = False
    weight_bytes_total = 2 * (E * H + H * E + H + E) * wsz
    if weight_bytes_total <= budget:
        br_r = br
        while resident_vmem(br_r) > budget and br_r > sublane:
            nb = max(sublane, _round_up(br_r // 2, sublane))
            if nb == br_r:
                break
            br_r = nb
        if resident_vmem(br_r) <= budget:
            resident = True
            while br_r * 2 <= br_cap and resident_vmem(br_r * 2) <= budget:
                br_r *= 2
            br = br_r

    th = H
    nbuf_w = 2
    if not resident:
        th = None
        for align in (256, 128):   # match MXU native tile widths
            th = _largest_aligned_divisor(H, align, max(block_h, align))
            if th is not None:
                break
        if th is None:
            # No lane-aligned divisor: zero-pad the hidden dim (padded units
            # contribute exactly 0 through the zero rows of W2).
            H_pad = _round_up(H, 128)
            w1 = jnp.pad(w1, ((0, 0), (0, H_pad - H)))
            b1 = jnp.pad(b1, ((0, 0), (0, H_pad - H)))
            w2 = jnp.pad(w2, ((0, H_pad - H), (0, 0)))
            H = H_pad
            th = _largest_aligned_divisor(H, 128, max(block_h, 128))

        while tiled_vmem(br, th, 2) > budget and br > sublane:
            nb = max(sublane, _round_up(br // 2, sublane))
            if nb == br:
                break
            br = nb
        while tiled_vmem(br, th, 2) > budget and th > 128:
            smaller = _largest_aligned_divisor(H, 128, th // 2)
            if smaller is None or smaller >= th:
                break
            th = smaller
        while br * 2 <= br_cap and tiled_vmem(br * 2, th, 2) <= budget:
            br *= 2   # amortize weight streaming (v6e especially)

        if th == H:
            resident = True   # single reduction step: skip scratch entirely
        else:
            grid_k = H // th
            if is_v5e and grid_k >= 3 and tiled_vmem(br, th, 3) <= budget:
                nbuf_w = 3    # hide exposed weight DMA on v5e's slower HBM

    # ---- build pallas_call -----------------------------------------------
    if resident:
        grid = (pl.cdiv(rows, br),)
        vmem_est = resident_vmem(br)
        weight_passes = 1
        in_specs = [
            pl.BlockSpec((br, E), lambda i: (i, 0)),   # x row tile
            pl.BlockSpec((E, H), lambda i: (0, 0)),    # W1 (resident: DMA'd once)
            pl.BlockSpec((1, H), lambda i: (0, 0)),    # b1
            pl.BlockSpec((H, E), lambda i: (0, 0)),    # W2 (resident: DMA'd once)
            pl.BlockSpec((1, E), lambda i: (0, 0)),    # b2
        ]
        out_spec = pl.BlockSpec((br, E), lambda i: (i, 0))
        kernel = _ffn_kernel_resident
        scratch = []
        dim_sem = ("parallel",)
    else:
        grid = (pl.cdiv(rows, br), H // th)
        vmem_est = tiled_vmem(br, th, nbuf_w)
        weight_passes = grid[0]
        in_specs = [
            pl.BlockSpec((br, E), lambda i, k: (i, 0)),          # x row tile
            _weight_spec((E, th), lambda i, k: (0, k), nbuf_w),  # W1 hidden tile
            pl.BlockSpec((1, th), lambda i, k: (0, k)),          # b1 hidden tile
            _weight_spec((th, E), lambda i, k: (k, 0), nbuf_w),  # W2 hidden tile
            pl.BlockSpec((1, E), lambda i, k: (0, 0)),           # b2
        ]
        out_spec = pl.BlockSpec((br, E), lambda i, k: (i, 0))
        kernel = _ffn_kernel_tiled
        scratch = [pltpu.VMEM((br, E), jnp.float32)]
        dim_sem = ("parallel", "arbitrary")

    vmem_limit = int(min(max(int(vmem_est * 1.25) + (4 << 20), 32 << 20),
                         vmem_ceiling))

    weight_bytes = (2 * E * H + H + E) * wsz
    cost = pl.CostEstimate(
        flops=int(4 * rows * E * H),                           # two matmuls
        transcendentals=0,
        bytes_accessed=int(rows * E * (xsz + osz)              # x read + out write
                           + weight_passes * weight_bytes),    # weight traffic
    )

    out2d = pl.pallas_call(
        kernel,
        out_shape=jax.ShapeDtypeStruct((rows, E), out_dtype),
        grid_spec=pltpu.PrefetchScalarGridSpec(
            num_scalar_prefetch=0,
            grid=grid,
            in_specs=in_specs,
            out_specs=out_spec,
            scratch_shapes=scratch,
        ),
        compiler_params=pltpu.CompilerParams(
            dimension_semantics=dim_sem,
            vmem_limit_bytes=vmem_limit,
        ),
        cost_estimate=cost,
    )(x2d, w1, b1, w2, b2)

    return out2d.reshape(orig_shape)


def init_feed_forward_params(key, embedding_size, ff_hidden_layer,
                             dtype=jnp.float32):
    """Deterministic init mimicking nn.Linear (uniform +/- 1/sqrt(fan_in))."""
    k1, k2, k3, k4 = jax.random.split(key, 4)
    lim1 = 1.0 / jnp.sqrt(embedding_size)
    lim2 = 1.0 / jnp.sqrt(ff_hidden_layer)
    # Stored as (in_features, out_features) for the kernel's x @ W layout.
    w1 = jax.random.uniform(k1, (embedding_size, ff_hidden_layer),
                            dtype, -lim1, lim1)
    b1 = jax.random.uniform(k2, (1, ff_hidden_layer), dtype, -lim1, lim1)
    w2 = jax.random.uniform(k3, (ff_hidden_layer, embedding_size),
                            dtype, -lim2, lim2)
    b2 = jax.random.uniform(k4, (1, embedding_size), dtype, -lim2, lim2)
    return w1, b1, w2, b2


def feed_forward_reference(x, w1, b1, w2, b2):
    h = jnp.maximum(x @ w1 + b1[0], 0.0)
    return h @ w2 + b2[0]


if __name__ == "__main__":
    batch, seq, embedding_size, ff_hidden_layer = 2, 8, 32, 64

    key = jax.random.PRNGKey(0)
    kx, kp = jax.random.split(key)
    x = jax.random.normal(kx, (batch, seq, embedding_size), jnp.float32)
    w1, b1, w2, b2 = init_feed_forward_params(kp, embedding_size,
                                              ff_hidden_layer)

    out = feed_forward(x, w1, b1, w2, b2)
    out = jax.block_until_ready(out)

    ref = feed_forward_reference(x, w1, b1, w2, b2)
    assert out.shape == x.shape
    assert jnp.allclose(out, ref, atol=1e-5, rtol=1e-5)

    print("KERNEL_OK")
</pallas_src>

<mosaic_0001>
module attributes {stable_mosaic.version = 11 : i64} {
  func.func @_ffn_kernel_resident(%arg0: i32, %arg1: memref<16x32xf32, #tpu.memory_space<vmem>>, %arg2: memref<32x64xf32, #tpu.memory_space<vmem>>, %arg3: memref<1x64xf32, #tpu.memory_space<vmem>>, %arg4: memref<64x32xf32, #tpu.memory_space<vmem>>, %arg5: memref<1x32xf32, #tpu.memory_space<vmem>>, %arg6: memref<16x32xf32, #tpu.memory_space<vmem>>) attributes {dimension_semantics = [#tpu.dimension_semantics<parallel>], iteration_bounds = array<i64: 1>, scalar_prefetch = 0 : i64, scratch_operands = 0 : i64, tpu.core_type = #tpu.core_type<tc>, window_params = [{transform_indices = @transform_0, window_bounds = array<i64: 16, 32>}, {pipeline_mode = #tpu.pipeline_mode<synchronous>, transform_indices = @transform_1, window_bounds = array<i64: 32, 64>}, {pipeline_mode = #tpu.pipeline_mode<synchronous>, transform_indices = @transform_2, window_bounds = array<i64: 1, 64>}, {pipeline_mode = #tpu.pipeline_mode<synchronous>, transform_indices = @transform_3, window_bounds = array<i64: 64, 32>}, {pipeline_mode = #tpu.pipeline_mode<synchronous>, transform_indices = @transform_4, window_bounds = array<i64: 1, 32>}, {transform_indices = @transform_5, window_bounds = array<i64: 16, 32>}]} {
    %c0 = arith.constant 0 : index
    %c0_0 = arith.constant 0 : index
    %0 = vector.load %arg1[%c0, %c0_0] : memref<16x32xf32, #tpu.memory_space<vmem>>, vector<16x32xf32>
    %c0_1 = arith.constant 0 : index
    %c0_2 = arith.constant 0 : index
    %1 = vector.load %arg2[%c0_1, %c0_2] : memref<32x64xf32, #tpu.memory_space<vmem>>, vector<32x64xf32>
    %cst = arith.constant dense<0.000000e+00> : vector<16x64xf32>
    %2 = tpu.matmul %0, %1, %cst {dimension_numbers = #tpu.dot_dimension_numbers<[1], [0], [0], [1], [0, 0, 1, 1], [], []>} : vector<16x32xf32>, vector<32x64xf32>, vector<16x64xf32> -> vector<16x64xf32>
    %c0_3 = arith.constant 0 : index
    %c0_4 = arith.constant 0 : index
    %3 = vector.load %arg3[%c0_3, %c0_4] : memref<1x64xf32, #tpu.memory_space<vmem>>, vector<1x64xf32>
    %4 = vector.broadcast %3 : vector<1x64xf32> to vector<16x64xf32>
    %5 = arith.addf %2, %4 : vector<16x64xf32>
    %cst_5 = arith.constant 0.000000e+00 : f32
    %6 = vector.broadcast %cst_5 : f32 to vector<16x64xf32>
    %7 = arith.maximumf %5, %6 : vector<16x64xf32>
    %c0_6 = arith.constant 0 : index
    %c0_7 = arith.constant 0 : index
    %8 = vector.load %arg4[%c0_6, %c0_7] : memref<64x32xf32, #tpu.memory_space<vmem>>, vector<64x32xf32>
    %cst_8 = arith.constant dense<0.000000e+00> : vector<16x32xf32>
    %9 = tpu.matmul %7, %8, %cst_8 {dimension_numbers = #tpu.dot_dimension_numbers<[1], [0], [0], [1], [0, 0, 1, 1], [], []>} : vector<16x64xf32>, vector<64x32xf32>, vector<16x32xf32> -> vector<16x32xf32>
    %c0_9 = arith.constant 0 : index
    %c0_10 = arith.constant 0 : index
    %10 = vector.load %arg5[%c0_9, %c0_10] : memref<1x32xf32, #tpu.memory_space<vmem>>, vector<1x32xf32>
    %11 = vector.broadcast %10 : vector<1x32xf32> to vector<16x32xf32>
    %12 = arith.addf %9, %11 : vector<16x32xf32>
    %c0_11 = arith.constant 0 : index
    %c0_12 = arith.constant 0 : index
    %13 = vector.load %arg6[%c0_11, %c0_12] : memref<16x32xf32, #tpu.memory_space<vmem>>, vector<16x32xf32>
    tpu.vector_store %arg6[%c0_11, %c0_12], %12 {strides = array<i32>} : memref<16x32xf32, #tpu.memory_space<vmem>>, vector<16x32xf32>,
    return
  }
  func.func @transform_0(%arg0: i32) -> (i32, i32) {
    %c0_i32 = arith.constant 0 : i32
    %c0_i32_0 = arith.constant 0 : i32
    return %arg0, %c0_i32 : i32, i32
  }
  func.func @transform_1(%arg0: i32) -> (i32, i32) {
    %c0_i32 = arith.constant 0 : i32
    %c0_i32_0 = arith.constant 0 : i32
    %c0_i32_1 = arith.constant 0 : i32
    return %c0_i32, %c0_i32_0 : i32, i32
  }
  func.func @transform_2(%arg0: i32) -> (i32, i32) {
    %c0_i32 = arith.constant 0 : i32
    %c0_i32_0 = arith.constant 0 : i32
    %c0_i32_1 = arith.constant 0 : i32
    return %c0_i32, %c0_i32_0 : i32, i32
  }
  func.func @transform_3(%arg0: i32) -> (i32, i32) {
    %c0_i32 = arith.constant 0 : i32
    %c0_i32_0 = arith.constant 0 : i32
    %c0_i32_1 = arith.constant 0 : i32
    return %c0_i32, %c0_i32_0 : i32, i32
  }
  func.func @transform_4(%arg0: i32) -> (i32, i32) {
    %c0_i32 = arith.constant 0 : i32
    %c0_i32_0 = arith.constant 0 : i32
    %c0_i32_1 = arith.constant 0 : i32
    return %c0_i32, %c0_i32_0 : i32, i32
  }
  func.func @transform_5(%arg0: i32) -> (i32, i32) {
    %c0_i32 = arith.constant 0 : i32
    %c0_i32_0 = arith.constant 0 : i32
    return %arg0, %c0_i32 : i32, i32
  }
}

</mosaic_0001>

<llo_original>
// kernel: feed_forward.1
$region0: #{feed_forward.1}
  #allocation0 [shape = 'u32[]', space=smem, size = 0x4, offset = 0x4, fixed_abs, tag = 'smem constant byte address 0x4 - core index']
  #allocation1 [shape = 'u32[144,128]{1,0:T(1,128)}', space=vmem, size = 0x12000, scoped, tag = 'internal scratch']
  %s0 = inlined_call_operand.vmem [shape: f32[16,32], index: 0, kind: input, shape index: {}]
  %s1 = inlined_call_operand.vmem [shape: f32[32,64], index: 1, kind: input, shape index: {}]
  %s2 = inlined_call_operand.vmem [shape: f32[1,64], index: 2, kind: input, shape index: {}]
  %s3 = inlined_call_operand.vmem [shape: f32[64,32], index: 3, kind: input, shape index: {}]
  %s4 = inlined_call_operand.vmem [shape: f32[1,32], index: 4, kind: input, shape index: {}]
  %s5 = inlined_call_operand.hbm [shape: f32[16,32], index: 5, kind: output, shape index: {}]
  %s6 = sld [smem:[#allocation0]]
  $region30: #{feed_forward.1} parent=0
    _
  %s8 = ssub.s32 1, %s6
  %s9 = scalar_select 0, %s8, %s6
  $region1: #{feed_forward.1} parent=0
    #allocation2 [shape = 'u8[8192]{0}', space=vmem, size = 0x2000, scoped, tag = 'output window, operand 0, single buffered']
    #allocation3 [shape = 's32[1]{0}', space=sflag, size = 0x4, scoped, tag = 'scoped memory for feed_forward.1']
    %10 = vsyncpa [#allocation3], 0
    // Predicated region
    $region2: #{feed_forward.1} parent=1 // pred_check
      _
    $region3: #{feed_forward.1} parent=1 // pred_check_branch
      %12 = sbr.rel (0) target = $region5
    $region4: #{feed_forward.1} parent=1 // pred_region
      _
    $region5: #{feed_forward.1} parent=1 // pred_fallthru
      _
    // Predicated region
    $region6: #{feed_forward.1} parent=1 // pred_check
      _
    $region7: #{feed_forward.1} parent=1 // pred_check_branch
      %14 = sbr.rel (0) target = $region9
    $region8: #{feed_forward.1} parent=1 // pred_region
      _
    $region9: #{feed_forward.1} parent=1 // pred_fallthru
      _
    // Predicated region
    $region10: #{feed_forward.1} parent=1 // pred_check
      _
    $region11: #{feed_forward.1} parent=1 // pred_check_branch
      %16 = sbr.rel (0) target = $region13
    $region12: #{feed_forward.1} parent=1 // pred_region
      _
    $region13: #{feed_forward.1} parent=1 // pred_fallthru
      _
    // Predicated region
    $region14: #{feed_forward.1} parent=1 // pred_check
      _
    $region15: #{feed_forward.1} parent=1 // pred_check_branch
      %18 = sbr.rel (0) target = $region17
    $region16: #{feed_forward.1} parent=1 // pred_region
      _
    $region17: #{feed_forward.1} parent=1 // pred_fallthru
      _
    // Predicated region
    $region18: #{feed_forward.1} parent=1 // pred_check
      _
    $region19: #{feed_forward.1} parent=1 // pred_check_branch
      %20 = sbr.rel (0) target = $region21
    $region20: #{feed_forward.1} parent=1 // pred_region
      _
    $region21: #{feed_forward.1} parent=1 // pred_fallthru
      _
    %v21 = vld [vmem:[%s0] sm:$0xff]
    %v22 = vld [vmem:[%s0 + $0x8] sm:$0xff]
    %v23 = vld [vmem:[%s1] sm:$0xff]
    %v24 = vld [vmem:[%s1 + $0x8] sm:$0xff]
    %v25 = vld [vmem:[%s1 + $0x10] sm:$0xff]
    %v26 = vld [vmem:[%s1 + $0x18] sm:$0xff]
    %v27 = vld [vmem:[%s2] sm:$0x1]
    %v29 = vlaneseq
    %v30 = vshrl.u32 %v29, 7
    %v31 = vsub.s32 0, %v30
    %v32 = vrot.slane %v27, %v31
    %vm34 = vcmask 261120
    %v36 = vsel %vm34, %v21, 0
    %v39 = vsel %vm34, %v22, 0
    %41 = vmatprep.subr.mxu0 0.0
    %42 = vmatpush1.msra.mxu0 0.0
    %43 = vmatprep.subr.mxu0 0.0
    %44 = vmatpush1.msra.mxu0 0.0
    %45 = vmatprep.subr.mxu0 0.0
    %46 = vmatpush1.msra.mxu0 0.0
    %47 = vmatprep.subr.mxu0 0.0
    %48 = vmatpush1.msra.mxu0 0.0
    %49 = vmatprep.subr.mxu0 0.0
    %50 = vmatpush1.msra.mxu0 0.0
    %51 = vmatprep.subr.mxu0 0.0
    %52 = vmatpush1.msra.mxu0 0.0
    %53 = vmatprep.subr.mxu0 0.0
    %54 = vmatpush1.msra.mxu0 0.0
    %55 = vmatprep.subr.mxu0 0.0
    %56 = vmatpush1.msra.mxu0 0.0
    %57 = vmatprep.subr.mxu0 0.0
    %58 = vmatpush1.msra.mxu0 0.0
    %59 = vmatprep.subr.mxu0 0.0
    %60 = vmatpush1.msra.mxu0 0.0
    %61 = vmatprep.subr.mxu0 0.0
    %62 = vmatpush1.msra.mxu0 0.0
    %63 = vmatprep.subr.mxu0 0.0
    %64 = vmatpush1.msra.mxu0 0.0
    %65 = vmatprep.subr.mxu0 0.0
    %66 = vmatpush1.msra.mxu0 %v26
    %67 = vmatprep.subr.mxu0 0.0
    %68 = vmatpush1.msra.mxu0 %v25
    %69 = vmatprep.subr.mxu0 0.0
    %70 = vmatpush1.msra.mxu0 %v24
    %71 = vmatprep.subr.mxu0 0.0
    %72 = vmatpush1.msra.mxu0 %v23
    %73 = vmatprep.subr.mxu0 0.0
    %74 = vmatpush2.msra.mxu0 0.0
    %75 = vmatprep.subr.mxu0 0.0
    %76 = vmatpush2.msra.mxu0 0.0
    %77 = vmatprep.subr.mxu0 0.0
    %78 = vmatpush2.msra.mxu0 0.0
    %79 = vmatprep.subr.mxu0 0.0
    %80 = vmatpush2.msra.mxu0 0.0
    %81 = vmatprep.subr.mxu0 0.0
    %82 = vmatpush2.msra.mxu0 0.0
    %83 = vmatprep.subr.mxu0 0.0
    %84 = vmatpush2.msra.mxu0 0.0
    %85 = vmatprep.subr.mxu0 0.0
    %86 = vmatpush2.msra.mxu0 0.0
    %87 = vmatprep.subr.mxu0 0.0
    %88 = vmatpush2.msra.mxu0 0.0
    %89 = vmatprep.subr.mxu0 0.0
    %90 = vmatpush2.msra.mxu0 0.0
    %91 = vmatprep.subr.mxu0 0.0
    %92 = vmatpush2.msra.mxu0 0.0
    %93 = vmatprep.subr.mxu0 0.0
    %94 = vmatpush2.msra.mxu0 0.0
    %95 = vmatprep.subr.mxu0 0.0
    %96 = vmatpush2.msra.mxu0 0.0
    %97 = vmatprep.subr.mxu0 0.0
    %98 = vmatpush2.msra.mxu0 0.0
    %99 = vmatprep.subr.mxu0 0.0
    %100 = vmatpush2.msra.mxu0 0.0
    %101 = vmatprep.subr.mxu0 0.0
    %102 = vmatpush2.msra.mxu0 0.0
    %103 = vmatprep.subr.mxu0 0.0
    %104 = vmatpush2.msra.mxu0 0.0
    %105 = vmatprep.mubr.f32.mxu0 0.0
    %106 = vmatmul.mubr.f32.gmra.mxu0 %v36
    %v107 = vpop.f32.mrf.mxu0
    %v108 = vadd.f32 %v32, %v107
    %v109 = vpop.f32.mrf.mxu0
    %110 = vmatprep.mubr.f32.mxu0 0.0
    %111 = vmatmul.mubr.f32.gmra.mxu0 %v39
    %v112 = vpop.f32.mrf.mxu0
    %v113 = vadd.f32 %v32, %v112
    %v114 = vpop.f32.mrf.mxu0
    %115 = vdwg.mxu0
    %v116 = vmax.f32 %v108, 0.0
    %v117 = vmax.f32 %v113, 0.0
    %v118 = vld [vmem:[%s3] sm:$0xff]
    %v119 = vld [vmem:[%s3 + $0x8] sm:$0xff]
    %v120 = vld [vmem:[%s3 + $0x10] sm:$0xff]
    %v121 = vld [vmem:[%s3 + $0x18] sm:$0xff]
    %v122 = vld [vmem:[%s3 + $0x20] sm:$0xff]
    %v123 = vld [vmem:[%s3 + $0x28] sm:$0xff]
    %v124 = vld [vmem:[%s3 + $0x30] sm:$0xff]
    %v125 = vld [vmem:[%s3 + $0x38] sm:$0xff]
    %v126 = vld [vmem:[%s4] sm:$0x1]
    %v128 = vlaneseq
    %v129 = vshrl.u32 %v128, 7
    %v130 = vsub.s32 0, %v129
    %v131 = vrot.slane %v126, %v130
    %vm133 = vcmask 523264
    %v135 = vsel %vm133, %v116, 0
    %v138 = vsel %vm133, %v117, 0
    %140 = vmatprep.subr.mxu0 0.0
    %141 = vmatpush1.msra.mxu0 0.0
    %142 = vmatprep.subr.mxu0 0.0
    %143 = vmatpush1.msra.mxu0 0.0
    %144 = vmatprep.subr.mxu0 0.0
    %145 = vmatpush1.msra.mxu0 0.0
    %146 = vmatprep.subr.mxu0 0.0
    %147 = vmatpush1.msra.mxu0 0.0
    %148 = vmatprep.subr.mxu0 0.0
    %149 = vmatpush1.msra.mxu0 0.0
    %150 = vmatprep.subr.mxu0 0.0
    %151 = vmatpush1.msra.mxu0 0.0
    %152 = vmatprep.subr.mxu0 0.0
    %153 = vmatpush1.msra.mxu0 0.0
    %154 = vmatprep.subr.mxu0 0.0
    %155 = vmatpush1.msra.mxu0 0.0
    %156 = vmatprep.subr.mxu0 0.0
    %157 = vmatpush1.msra.mxu0 %v125
    %158 = vmatprep.subr.mxu0 0.0
    %159 = vmatpush1.msra.mxu0 %v124
    %160 = vmatprep.subr.mxu0 0.0
    %161 = vmatpush1.msra.mxu0 %v123
    %162 = vmatprep.subr.mxu0 0.0
    %163 = vmatpush1.msra.mxu0 %v122
    %164 = vmatprep.subr.mxu0 0.0
    %165 = vmatpush1.msra.mxu0 %v121
    %166 = vmatprep.subr.mxu0 0.0
    %167 = vmatpush1.msra.mxu0 %v120
    %168 = vmatprep.subr.mxu0 0.0
    %169 = vmatpush1.msra.mxu0 %v119
    %170 = vmatprep.subr.mxu0 0.0
    %171 = vmatpush1.msra.mxu0 %v118
    %172 = vmatprep.subr.mxu0 0.0
    %173 = vmatpush2.msra.mxu0 0.0
    %174 = vmatprep.subr.mxu0 0.0
    %175 = vmatpush2.msra.mxu0 0.0
    %176 = vmatprep.subr.mxu0 0.0
    %177 = vmatpush2.msra.mxu0 0.0
    %178 = vmatprep.subr.mxu0 0.0
    %179 = vmatpush2.msra.mxu0 0.0
    %180 = vmatprep.subr.mxu0 0.0
    %181 = vmatpush2.msra.mxu0 0.0
    %182 = vmatprep.subr.mxu0 0.0
    %183 = vmatpush2.msra.mxu0 0.0
    %184 = vmatprep.subr.mxu0 0.0
    %185 = vmatpush2.msra.mxu0 0.0
    %186 = vmatprep.subr.mxu0 0.0
    %187 = vmatpush2.msra.mxu0 0.0
    %188 = vmatprep.subr.mxu0 0.0
    %189 = vmatpush2.msra.mxu0 0.0
    %190 = vmatprep.subr.mxu0 0.0
    %191 = vmatpush2.msra.mxu0 0.0
    %192 = vmatprep.subr.mxu0 0.0
    %193 = vmatpush2.msra.mxu0 0.0
    %194 = vmatprep.subr.mxu0 0.0
    %195 = vmatpush2.msra.mxu0 0.0
    %196 = vmatprep.subr.mxu0 0.0
    %197 = vmatpush2.msra.mxu0 0.0
    %198 = vmatprep.subr.mxu0 0.0
    %199 = vmatpush2.msra.mxu0 0.0
    %200 = vmatprep.subr.mxu0 0.0
    %201 = vmatpush2.msra.mxu0 0.0
    %202 = vmatprep.subr.mxu0 0.0
    %203 = vmatpush2.msra.mxu0 0.0
    %204 = vmatprep.mubr.f32.mxu0 0.0
    %205 = vmatmul.mubr.f32.gmra.mxu0 %v135
    %v206 = vpop.f32.mrf.mxu0
    %v207 = vadd.f32 %v131, %v206
    %v208 = vpop.f32.mrf.mxu0
    %209 = vmatprep.mubr.f32.mxu0 0.0
    %210 = vmatmul.mubr.f32.gmra.mxu0 %v138
    %v211 = vpop.f32.mrf.mxu0
    %v212 = vadd.f32 %v131, %v211
    %v213 = vpop.f32.mrf.mxu0
    %214 = vdwg.mxu0
    %215 = vst.msk [vmem:[#allocation2] sm:$0xff] %vm34, %v207
    %216 = vst.msk [vmem:[#allocation2 + $0x8] sm:$0xff] %vm34, %v212
    // Predicated region
    $region22: #{feed_forward.1} parent=1 // pred_check
      _
    $region23: #{feed_forward.1} parent=1 // pred_check_branch
      %218 = sbr.rel (0) target = $region25
    $region24: #{feed_forward.1} parent=1 // pred_region
      %s220 = ssub.s32 256, 256
      %221 = vsyncadd [#allocation3], %s220
      %s222 = sshll.u32 [#allocation2], 4
      %s223 = int_to_ptr.vmem [resolvable:$true] %s222
      %228 = dma.vmem_to_hbm [thread:$0]  %s223, 256, %s5, [#allocation3], 128, 128, 8
    $region25: #{feed_forward.1} parent=1 // pred_fallthru
      _
    // Predicated region
    $region26: #{feed_forward.1} parent=1 // pred_check
      _
    $region27: #{feed_forward.1} parent=1 // pred_check_branch
      %230 = sbr.rel (0) target = $region29
    $region28: #{feed_forward.1} parent=1 // pred_region
      %231 = dma.done [#allocation3], 256
    $region29: #{feed_forward.1} parent=1 // pred_fallthru
      _
    %232 = vsyncpa [#allocation3], 1

</llo_original>
